<compile_context>
chip_gen: v7x
topology: tpu7x:2x2x1
jax: 0.10.0
libtpu: 0.0.40
codegen_flags: <defaults>
</compile_context>

<pallas_src>
import functools

import jax
import jax.numpy as jnp
from jax.experimental import pallas as pl
from jax.experimental.pallas import tpu as pltpu


def _round_up(x, m):
    return (x + m - 1) // m * m


# --------------------------------------------------------------------------
# Kernels
# --------------------------------------------------------------------------
def _mh_linear_single_k_kernel(x_ref, w_ref, b_ref, o_ref, *, precision):
    # Whole reduction fits in one k-step: no scratch accumulator, no
    # read-modify-write — dot + bias straight to the output tile.
    o_ref[...] = (jnp.dot(x_ref[...], w_ref[...],
                          preferred_element_type=jnp.float32,
                          precision=precision)
                  + b_ref[...]).astype(o_ref.dtype)


def _mh_linear_multi_k_kernel(x_ref, w_ref, b_ref, o_ref, acc_ref, *, precision):
    # Grid: (i over M tiles, j over N tiles, k over K tiles); k is the trailing
    # "arbitrary" reduction axis with an f32 VMEM accumulator (P3).
    k = pl.program_id(2)

    @pl.when(k == 0)
    def _():
        # Initialize the accumulator with the bias — the zero-fill we'd do
        # anyway becomes the bias fill, so the epilogue add disappears.
        acc_ref[...] = jnp.broadcast_to(b_ref[...], acc_ref.shape)

    acc_ref[...] += jnp.dot(x_ref[...], w_ref[...],
                            preferred_element_type=jnp.float32,
                            precision=precision)

    @pl.when(k == pl.num_programs(2) - 1)
    def _():
        o_ref[...] = acc_ref[...].astype(o_ref.dtype)


# --------------------------------------------------------------------------
# Tiling helpers
# --------------------------------------------------------------------------
def _choose_tm(B, sublane, max_tm=512):
    """Pick a row-tile that avoids pathological padding (e.g. B=260 -> M=512)."""
    bp = _round_up(B, sublane)
    if bp <= max_tm:
        return bp                      # exact (sublane-aligned) fit, zero extra pad
    for c in (512, 256, 128, 64):      # largest standard tile with <=12.5% waste
        if _round_up(B, c) - B <= B // 8:
            return c
    return 64


def _ensure_parallel_extent(tm, tn, M, N, sublane):
    """v7x has 2 TensorCores sharded over the 'parallel' axes; make sure there
    are >= 2 parallel blocks when the shape allows it.  Prefer splitting N
    (each core then streams half the weight) over M."""
    if (M // tm) * (N // tn) >= 2:
        return tm, tn
    if tn >= 256 and (tn // 2) % 128 == 0:
        return tm, tn // 2
    if tm >= 2 * sublane and (tm // 2) % sublane == 0:
        return tm // 2, tn
    return tm, tn


# --------------------------------------------------------------------------
# Parameter preparation — done ONCE, outside the per-call path.
# --------------------------------------------------------------------------
def prepare_multihead_params(w_pt, b, *, n_tasks, output_dim,
                             compute_dtype=jnp.bfloat16, tn=512, tk=None):
    """Pad / transpose / cast the classifier parameters once.

    w_pt: (F, input_dim)  — PyTorch nn.Linear weight layout (out, in)
    b:    (F,)
    compute_dtype: MXU feed dtype (default bf16; accumulation stays f32).
    """
    F, D = w_pt.shape
    assert F == n_tasks * output_dim, (F, n_tasks, output_dim)
    assert b.shape == (F,), b.shape

    tn = min(tn, _round_up(F, 128))
    Kp = _round_up(D, 128)
    if tk is None:
        tk = Kp if Kp <= 2048 else 1024          # full K (single step) when it fits
    tk = min(_round_up(tk, 128), Kp)
    K = _round_up(Kp, tk)
    N = _round_up(F, tn)

    w_c = w_pt.T.astype(compute_dtype)           # (D, F)
    w_p = jnp.zeros((K, N), compute_dtype).at[:D, :F].set(w_c)
    b_p = jnp.zeros((1, N), jnp.float32).at[0, :F].set(b.astype(jnp.float32))

    return dict(w=w_p, b=b_p, D=D, F=F, K=K, N=N, tn=tn, tk=tk,
                n_tasks=n_tasks, output_dim=output_dim,
                compute_dtype=jnp.dtype(compute_dtype))


# --------------------------------------------------------------------------
# Forward
# --------------------------------------------------------------------------
def multihead_classifier_forward(x, params, *, use_pallas=None, w_buffer_count=2):
    """Forward pass: (B, input_dim) -> (B, n_tasks, output_dim)."""
    B, D = x.shape
    assert D == params["D"], (D, params["D"])

    cd = params["compute_dtype"]
    F, K, N = params["F"], params["K"], params["N"]
    tn, tk = params["tn"], params["tk"]
    n_tasks, output_dim = params["n_tasks"], params["output_dim"]
    out_dtype = x.dtype

    # Strict f32 path gets true f32 MXU passes; bf16 uses the native feed.
    precision = jax.lax.Precision.HIGHEST if cd == jnp.dtype(jnp.float32) else None

    sublane = 8 if cd.itemsize == 4 else 16
    tm = _choose_tm(B, sublane)
    M = _round_up(B, tm)
    tm, tn = _ensure_parallel_extent(tm, tn, M, N, sublane)
    n_k = K // tk

    # Tiny-problem bypass: a standalone pallas_call is pure launch overhead for
    # a few-KFLOP head; XLA's fused dot is strictly faster there.
    if use_pallas is None:
        use_pallas = (M * N * K) > (128 * 256 * 512)
    if not use_pallas:
        x_c = x.astype(cd)
        if K != D:
            x_c = jnp.pad(x_c, ((0, 0), (0, K - D)))
        out = jnp.dot(x_c, params["w"], preferred_element_type=jnp.float32,
                      precision=precision) + params["b"]
        return out[:, :F].astype(out_dtype).reshape(-1, n_tasks, output_dim)

    # Activations: cast, and pad only when not already tile-aligned.
    x_c = x.astype(cd)
    if (M, K) != (B, D):
        x_p = jnp.zeros((M, K), cd).at[:B, :D].set(x_c)
    else:
        x_p = x_c

    in_item = cd.itemsize
    out_item = jnp.dtype(out_dtype).itemsize

    # VMEM footprint (double-buffered streams + accumulator) -> explicit limit.
    need = (2 * tm * tk * in_item
            + max(2, w_buffer_count) * tk * tn * in_item
            + 2 * tn * 4
            + 2 * tm * tn * out_item
            + (tm * tn * 4 if n_k > 1 else 0))
    vmem_limit = int(min(48 * 1024 * 1024, max(2 * need, 16 * 1024 * 1024)))

    # Advisory cost: real (unpadded) flops, actual streamed bytes.
    flops = 2 * B * D * F
    bytes_accessed = (x_p.size * in_item + params["w"].size * in_item
                      + params["b"].size * 4 + B * F * out_item)

    w_spec_kwargs = {}
    if w_buffer_count > 2:   # deeper buffering on the dominant HBM stream
        w_spec_kwargs["pipeline_mode"] = pl.Buffered(w_buffer_count)

    if n_k == 1:
        kernel = functools.partial(_mh_linear_single_k_kernel, precision=precision)
        grid = (M // tm, N // tn)
        in_specs = [
            pl.BlockSpec((tm, tk), lambda i, j: (i, 0)),                    # x
            pl.BlockSpec((tk, tn), lambda i, j: (0, j), **w_spec_kwargs),   # w
            pl.BlockSpec((1, tn), lambda i, j: (0, j)),                     # bias
        ]
        out_specs = pl.BlockSpec((tm, tn), lambda i, j: (i, j))
        scratch = []
        dims = ("parallel", "parallel")
    else:
        kernel = functools.partial(_mh_linear_multi_k_kernel, precision=precision)
        grid = (M // tm, N // tn, n_k)
        in_specs = [
            pl.BlockSpec((tm, tk), lambda i, j, k: (i, k)),                  # x
            pl.BlockSpec((tk, tn), lambda i, j, k: (k, j), **w_spec_kwargs), # w
            pl.BlockSpec((1, tn), lambda i, j, k: (0, j)),                   # bias
        ]
        out_specs = pl.BlockSpec((tm, tn), lambda i, j, k: (i, j))
        scratch = [pltpu.VMEM((tm, tn), jnp.float32)]
        dims = ("parallel", "parallel", "arbitrary")

    out_p = pl.pallas_call(
        kernel,
        out_shape=jax.ShapeDtypeStruct((M, N), out_dtype),
        grid_spec=pltpu.PrefetchScalarGridSpec(
            num_scalar_prefetch=0,
            grid=grid,
            in_specs=in_specs,
            out_specs=out_specs,
            scratch_shapes=scratch,
        ),
        compiler_params=pltpu.CompilerParams(
            dimension_semantics=dims,
            vmem_limit_bytes=vmem_limit,
        ),
        cost_estimate=pl.CostEstimate(
            flops=flops, transcendentals=0, bytes_accessed=bytes_accessed),
    )(x_p, params["w"], params["b"])

    # Drop padding, then the equivalent of .view(-1, N_tasks, output_dim).
    return out_p[:B, :F].reshape(-1, n_tasks, output_dim)


# --------------------------------------------------------------------------
# Test
# --------------------------------------------------------------------------
if __name__ == "__main__":
    key = jax.random.PRNGKey(0)

    # --- Case 1: shapes consistent with the module defaults (small). ---
    B, input_dim, N_tasks, output_dim = 4, 32, 10, 1
    F = N_tasks * output_dim
    kx, kw, kb, k2 = jax.random.split(key, 4)

    x = jax.random.normal(kx, (B, input_dim), dtype=jnp.float32)
    bound = 1.0 / (input_dim ** 0.5)
    w_pt = jax.random.uniform(kw, (F, input_dim), minval=-bound, maxval=bound,
                              dtype=jnp.float32)
    b_pt = jax.random.uniform(kb, (F,), minval=-bound, maxval=bound,
                              dtype=jnp.float32)

    ref = (x @ w_pt.T + b_pt).reshape(-1, N_tasks, output_dim)

    # Default bf16 weight streaming, f32 accumulation (single-k kernel).
    params_bf16 = prepare_multihead_params(
        w_pt, b_pt, n_tasks=N_tasks, output_dim=output_dim,
        compute_dtype=jnp.bfloat16)
    out_bf16 = jax.block_until_ready(
        multihead_classifier_forward(x, params_bf16, use_pallas=True))
    assert out_bf16.shape == (B, N_tasks, output_dim), out_bf16.shape
    assert jnp.allclose(out_bf16, ref, atol=3e-2, rtol=3e-2)

    # Strict f32 path (precision=HIGHEST on the MXU).
    params_f32 = prepare_multihead_params(
        w_pt, b_pt, n_tasks=N_tasks, output_dim=output_dim,
        compute_dtype=jnp.float32)
    out_f32 = jax.block_until_ready(
        multihead_classifier_forward(x, params_f32, use_pallas=True))
    assert jnp.allclose(out_f32, ref, atol=1e-5, rtol=1e-5)

    # Auto path (tiny problem -> fused-dot bypass) must match too.
    out_auto = jax.block_until_ready(multihead_classifier_forward(x, params_f32))
    assert jnp.allclose(out_auto, ref, atol=1e-5, rtol=1e-5)

    # --- Case 2: exercise the multi-k accumulator kernel (forced small tk). ---
    B2, input_dim2, N_tasks2, output_dim2 = 32, 384, 10, 4
    F2 = N_tasks2 * output_dim2
    kx2, kw2, kb2 = jax.random.split(k2, 3)
    x2 = jax.random.normal(kx2, (B2, input_dim2), dtype=jnp.float32)
    bound2 = 1.0 / (input_dim2 ** 0.5)
    w2 = jax.random.uniform(kw2, (F2, input_dim2), minval=-bound2, maxval=bound2,
                            dtype=jnp.float32)
    b2 = jax.random.uniform(kb2, (F2,), minval=-bound2, maxval=bound2,
                            dtype=jnp.float32)
    ref2 = (x2 @ w2.T + b2).reshape(-1, N_tasks2, output_dim2)

    params2 = prepare_multihead_params(
        w2, b2, n_tasks=N_tasks2, output_dim=output_dim2,
        compute_dtype=jnp.float32, tk=128)   # 3 k-steps -> accumulator path
    out2 = jax.block_until_ready(
        multihead_classifier_forward(x2, params2, use_pallas=True))
    assert out2.shape == (B2, N_tasks2, output_dim2), out2.shape
    assert jnp.allclose(out2, ref2, atol=1e-5, rtol=1e-5)

    print("KERNEL_OK")
</pallas_src>

<mosaic_0001>
module attributes {stable_mosaic.version = 11 : i64} {
  func.func @_mh_linear_single_k_kernel(%arg0: i32, %arg1: i32, %arg2: memref<16x128xbf16, #tpu.memory_space<vmem>>, %arg3: memref<128x128xbf16, #tpu.memory_space<vmem>>, %arg4: memref<1x128xf32, #tpu.memory_space<vmem>>, %arg5: memref<16x128xf32, #tpu.memory_space<vmem>>) attributes {dimension_semantics = [#tpu.dimension_semantics<parallel>, #tpu.dimension_semantics<parallel>], iteration_bounds = array<i64: 1, 1>, scalar_prefetch = 0 : i64, scratch_operands = 0 : i64, tpu.core_type = #tpu.core_type<tc>, window_params = [{transform_indices = @transform_0, window_bounds = array<i64: 16, 128>}, {transform_indices = @transform_1, window_bounds = array<i64: 128, 128>}, {transform_indices = @transform_2, window_bounds = array<i64: 1, 128>}, {transform_indices = @transform_3, window_bounds = array<i64: 16, 128>}]} {
    %c0 = arith.constant 0 : index
    %c0_0 = arith.constant 0 : index
    %0 = vector.load %arg2[%c0, %c0_0] : memref<16x128xbf16, #tpu.memory_space<vmem>>, vector<16x128xbf16>
    %c0_1 = arith.constant 0 : index
    %c0_2 = arith.constant 0 : index
    %1 = vector.load %arg3[%c0_1, %c0_2] : memref<128x128xbf16, #tpu.memory_space<vmem>>, vector<128x128xbf16>
    %cst = arith.constant dense<0.000000e+00> : vector<16x128xf32>
    %2 = tpu.matmul %0, %1, %cst {dimension_numbers = #tpu.dot_dimension_numbers<[1], [0], [0], [1], [0, 0, 1, 1], [], []>} : vector<16x128xbf16>, vector<128x128xbf16>, vector<16x128xf32> -> vector<16x128xf32>
    %c0_3 = arith.constant 0 : index
    %c0_4 = arith.constant 0 : index
    %3 = vector.load %arg4[%c0_3, %c0_4] : memref<1x128xf32, #tpu.memory_space<vmem>>, vector<1x128xf32>
    %4 = vector.broadcast %3 : vector<1x128xf32> to vector<16x128xf32>
    %5 = arith.addf %2, %4 : vector<16x128xf32>
    %c0_5 = arith.constant 0 : index
    %c0_6 = arith.constant 0 : index
    %6 = vector.load %arg5[%c0_5, %c0_6] : memref<16x128xf32, #tpu.memory_space<vmem>>, vector<16x128xf32>
    tpu.vector_store %arg5[%c0_5, %c0_6], %5 {strides = array<i32>} : memref<16x128xf32, #tpu.memory_space<vmem>>, vector<16x128xf32>,
    return
  }
  func.func @transform_0(%arg0: i32, %arg1: i32) -> (i32, i32) {
    %c0_i32 = arith.constant 0 : i32
    %c0_i32_0 = arith.constant 0 : i32
    return %arg0, %c0_i32 : i32, i32
  }
  func.func @transform_1(%arg0: i32, %arg1: i32) -> (i32, i32) {
    %c0_i32 = arith.constant 0 : i32
    %c0_i32_0 = arith.constant 0 : i32
    return %c0_i32, %arg1 : i32, i32
  }
  func.func @transform_2(%arg0: i32, %arg1: i32) -> (i32, i32) {
    %c0_i32 = arith.constant 0 : i32
    %c0_i32_0 = arith.constant 0 : i32
    return %c0_i32, %arg1 : i32, i32
  }
  func.func @transform_3(%arg0: i32, %arg1: i32) -> (i32, i32) {
    %c0_i32 = arith.constant 0 : i32
    return %arg0, %arg1 : i32, i32
  }
}

</mosaic_0001>

<llo_original>
// kernel: tpu_custom_call.1
$region0: #{tpu_custom_call.1}
  #allocation0 [shape = 'u32[]', space=smem, size = 0x4, offset = 0x4, fixed_abs, tag = 'smem constant byte address 0x4 - core index']
  #allocation1 [shape = 'u32[144,128]{1,0:T(1,128)}', space=vmem, size = 0x12000, scoped, tag = 'internal scratch']
  %s0 = inlined_call_operand.hbm [shape: bf16[16,128], index: 0, kind: input, shape index: {}]
  %s1 = inlined_call_operand.hbm [shape: bf16[128,128], index: 1, kind: input, shape index: {}]
  %s2 = inlined_call_operand.vmem [shape: f32[1,128], index: 2, kind: input, shape index: {}]
  %s3 = inlined_call_operand.hbm [shape: f32[16,128], index: 3, kind: output, shape index: {}]
  %s4 = sld [smem:[#allocation0]]
  $region30: #{tpu_custom_call.1} parent=0
    _
  %s6 = ssub.s32 1, %s4
  %s7 = scalar_select 0, %s6, %s4
  $region1: #{tpu_custom_call.1} parent=0
    #allocation2 [shape = 'u8[4096]{0}', space=vmem, size = 0x1000, scoped, tag = 'input window, operand 0, single buffered']
    #allocation3 [shape = 's32[1]{0}', space=sflag, size = 0x4, scoped, tag = 'scoped memory for tpu_custom_call.1']
    #allocation4 [shape = 's32[1]{0}', space=sflag, size = 0x4, scoped, tag = 'scoped memory for tpu_custom_call.1']
    #allocation5 [shape = 'u8[32768]{0}', space=vmem, size = 0x8000, scoped, tag = 'input window, operand 1, single buffered']
    #allocation6 [shape = 's32[1]{0}', space=sflag, size = 0x4, scoped, tag = 'scoped memory for tpu_custom_call.1']
    #allocation7 [shape = 'u8[8192]{0}', space=vmem, size = 0x2000, scoped, tag = 'output window, operand 0, single buffered']
    %8 = vsyncpa [#allocation3], 0
    %9 = vsyncpa [#allocation6], 0
    %10 = vsyncpa [#allocation4], 0
    // Predicated region
    $region2: #{tpu_custom_call.1} parent=1 // pred_check
      _
    $region3: #{tpu_custom_call.1} parent=1 // pred_check_branch
      %12 = sbr.rel (0) target = $region5
    $region4: #{tpu_custom_call.1} parent=1 // pred_region
      %s14 = ssub.s32 128, 128
      %15 = vsyncadd [#allocation3], %s14
      %s16 = sshll.u32 [#allocation2], 4
      %s17 = int_to_ptr.vmem [resolvable:$true] %s16
      %22 = dma.hbm_to_vmem [thread:$0]  %s0, 128, %s17, [#allocation3], 64, 64, 4
    $region5: #{tpu_custom_call.1} parent=1 // pred_fallthru
      _
    // Predicated region
    $region6: #{tpu_custom_call.1} parent=1 // pred_check
      _
    $region7: #{tpu_custom_call.1} parent=1 // pred_check_branch
      %24 = sbr.rel (0) target = $region9
    $region8: #{tpu_custom_call.1} parent=1 // pred_region
      %s26 = ssub.s32 1024, 1024
      %27 = vsyncadd [#allocation6], %s26
      %s28 = sshll.u32 [#allocation5], 4
      %s29 = int_to_ptr.vmem [resolvable:$true] %s28
      %34 = dma.hbm_to_vmem [thread:$0]  %s1, 1024, %s29, [#allocation6], 64, 64, 4
    $region9: #{tpu_custom_call.1} parent=1 // pred_fallthru
      _
    // Predicated region
    $region10: #{tpu_custom_call.1} parent=1 // pred_check
      _
    $region11: #{tpu_custom_call.1} parent=1 // pred_check_branch
      %36 = sbr.rel (0) target = $region13
    $region12: #{tpu_custom_call.1} parent=1 // pred_region
      _
    $region13: #{tpu_custom_call.1} parent=1 // pred_fallthru
      _
    // Predicated region
    $region14: #{tpu_custom_call.1} parent=1 // pred_check
      _
    $region15: #{tpu_custom_call.1} parent=1 // pred_check_branch
      %38 = sbr.rel (0) target = $region17
    $region16: #{tpu_custom_call.1} parent=1 // pred_region
      %39 = dma.done [#allocation3], 128
    $region17: #{tpu_custom_call.1} parent=1 // pred_fallthru
      _
    // Predicated region
    $region18: #{tpu_custom_call.1} parent=1 // pred_check
      _
    $region19: #{tpu_custom_call.1} parent=1 // pred_check_branch
      %41 = sbr.rel (0) target = $region21
    $region20: #{tpu_custom_call.1} parent=1 // pred_region
      %42 = dma.done [#allocation6], 1024
    $region21: #{tpu_custom_call.1} parent=1 // pred_fallthru
      _
    %v44 = vld [vmem:[#allocation2] sm:$0xf]
    %v45 = vld [vmem:[#allocation2 + $0x4] sm:$0xf]
    %v46 = vld [vmem:[#allocation5] sm:$0xf]
    %v47 = vld [vmem:[#allocation5 + $0x4] sm:$0xf]
    %v48 = vld [vmem:[#allocation5 + $0x8] sm:$0xf]
    %v49 = vld [vmem:[#allocation5 + $0xc] sm:$0xf]
    %v50 = vld [vmem:[#allocation5 + $0x10] sm:$0xf]
    %v51 = vld [vmem:[#allocation5 + $0x14] sm:$0xf]
    %v52 = vld [vmem:[#allocation5 + $0x18] sm:$0xf]
    %v53 = vld [vmem:[#allocation5 + $0x1c] sm:$0xf]
    %v54 = vld [vmem:[#allocation5 + $0x20] sm:$0xf]
    %v55 = vld [vmem:[#allocation5 + $0x24] sm:$0xf]
    %v56 = vld [vmem:[#allocation5 + $0x28] sm:$0xf]
    %v57 = vld [vmem:[#allocation5 + $0x2c] sm:$0xf]
    %v58 = vld [vmem:[#allocation5 + $0x30] sm:$0xf]
    %v59 = vld [vmem:[#allocation5 + $0x34] sm:$0xf]
    %v60 = vld [vmem:[#allocation5 + $0x38] sm:$0xf]
    %v61 = vld [vmem:[#allocation5 + $0x3c] sm:$0xf]
    %v62 = vld [vmem:[%s2] sm:$0x1]
    %v64 = vlaneseq
    %v65 = vshrl.u32 %v64, 7
    %v66 = vsub.s32 0, %v65
    %v67 = vrot.slane %v62, %v66
    %v71 = vunpack.c.l.b16 %v44
    %v72 = vunpack.c.l.b16 %v45
    %v73 = vpack.c.b16 %v72, %v71
    %v91 = vunpack.c.l.b16 %v46
    %v92 = vunpack.c.l.b16 %v47
    %v93 = vunpack.c.l.b16 %v48
    %v94 = vunpack.c.l.b16 %v49
    %v95 = vunpack.c.l.b16 %v50
    %v96 = vunpack.c.l.b16 %v51
    %v97 = vunpack.c.l.b16 %v52
    %v98 = vunpack.c.l.b16 %v53
    %v99 = vunpack.c.l.b16 %v54
    %v100 = vunpack.c.l.b16 %v55
    %v101 = vunpack.c.l.b16 %v56
    %v102 = vunpack.c.l.b16 %v57
    %v103 = vunpack.c.l.b16 %v58
    %v104 = vunpack.c.l.b16 %v59
    %v105 = vunpack.c.l.b16 %v60
    %v106 = vunpack.c.l.b16 %v61
    %v107 = vpack.c.b16 %v92, %v91
    %v108 = vpack.c.b16 %v94, %v93
    %v109 = vpack.c.b16 %v96, %v95
    %v110 = vpack.c.b16 %v98, %v97
    %v111 = vpack.c.b16 %v100, %v99
    %v112 = vpack.c.b16 %v102, %v101
    %v113 = vpack.c.b16 %v104, %v103
    %v114 = vpack.c.b16 %v106, %v105
    %123 = vmatprep.subr.bf16.mxu0 0
    %124 = vmatpush1.bf16.msra.mxu0 %v107
    %125 = vmatprep.subr.bf16.mxu0 0
    %126 = vmatpush1.bf16.msra.mxu0 %v108
    %127 = vmatprep.subr.bf16.mxu0 0
    %128 = vmatpush1.bf16.msra.mxu0 %v109
    %129 = vmatprep.subr.bf16.mxu0 0
    %130 = vmatpush1.bf16.msra.mxu0 %v110
    %131 = vmatprep.subr.bf16.mxu0 0
    %132 = vmatpush1.bf16.msra.mxu0 %v111
    %133 = vmatprep.subr.bf16.mxu0 0
    %134 = vmatpush1.bf16.msra.mxu0 %v112
    %135 = vmatprep.subr.bf16.mxu0 0
    %136 = vmatpush1.bf16.msra.mxu0 %v113
    %137 = vmatprep.subr.bf16.mxu0 0
    %138 = vmatpush1.bf16.msra.mxu0 %v114
    %139 = vmatprep.subr.bf16.mxu0 0
    %140 = vmatpush1.bf16.msra.mxu0 0
    %141 = vmatprep.subr.bf16.mxu0 0
    %142 = vmatpush1.bf16.msra.mxu0 0
    %143 = vmatprep.subr.bf16.mxu0 0
    %144 = vmatpush1.bf16.msra.mxu0 0
    %145 = vmatprep.subr.bf16.mxu0 0
    %146 = vmatpush1.bf16.msra.mxu0 0
    %147 = vmatprep.subr.bf16.mxu0 0
    %148 = vmatpush1.bf16.msra.mxu0 0
    %149 = vmatprep.subr.bf16.mxu0 0
    %150 = vmatpush1.bf16.msra.mxu0 0
    %151 = vmatprep.subr.bf16.mxu0 0
    %152 = vmatpush1.bf16.msra.mxu0 0
    %153 = vmatprep.subr.bf16.mxu0 0
    %154 = vmatpush1.bf16.msra.mxu0 0
    %155 = vmatprep.mubr.bf16.mxu0 0
    %156 = vmatmul.mubr.bf16.gmra.mrb[0].mxu0 %v73
    %v157 = vpop.f32.mrb[0].mxu0
    %v158 = vadd.f32 %v67, %v157
    %v159 = vpop.f32.mrb[0].mxu0
    %v160 = vpop.f32.mrb[0].mxu0
    %v161 = vadd.f32 %v67, %v160
    %v162 = vpop.f32.mrb[0].mxu0
    %163 = vdwg.mxu0
    %164 = vst [vmem:[#allocation7] sm:$0xff] %v158
    %165 = vst [vmem:[#allocation7 + $0x8] sm:$0xff] %v161
    // Predicated region
    $region22: #{tpu_custom_call.1} parent=1 // pred_check
      _
    $region23: #{tpu_custom_call.1} parent=1 // pred_check_branch
      %167 = sbr.rel (0) target = $region25
    $region24: #{tpu_custom_call.1} parent=1 // pred_region
      %s169 = ssub.s32 256, 256
      %170 = vsyncadd [#allocation4], %s169
      %s171 = sshll.u32 [#allocation7], 4
      %s172 = int_to_ptr.vmem [resolvable:$true] %s171
      %177 = dma.vmem_to_hbm [thread:$0]  %s172, 256, %s3, [#allocation4], 128, 128, 8
    $region25: #{tpu_custom_call.1} parent=1 // pred_fallthru
      _
    // Predicated region
    $region26: #{tpu_custom_call.1} parent=1 // pred_check
      _
    $region27: #{tpu_custom_call.1} parent=1 // pred_check_branch
      %179 = sbr.rel (0) target = $region29
    $region28: #{tpu_custom_call.1} parent=1 // pred_region
      %180 = dma.done [#allocation4], 256
    $region29: #{tpu_custom_call.1} parent=1 // pred_fallthru
      _
    %181 = vsyncpa [#allocation3], 1
    %182 = vsyncpa [#allocation6], 1
    %183 = vsyncpa [#allocation4], 1

</llo_original>
